<compile_context>
chip_gen: v6e
topology: v6e:2x2x1
jax: 0.10.0
libtpu: 0.0.40
codegen_flags: <defaults>
</compile_context>

<pallas_src>
import functools

import jax
import jax.numpy as jnp
from jax import lax
from jax.experimental import pallas as pl
from jax.experimental.pallas import tpu as pltpu

N_EMBED = 384      # n_embed in the PyTorch module
BLOCK_SIZE = 256   # block_size in the PyTorch module (max sequence length)


def _head_kernel(x_ref, w_ref, b_ref, o_ref, k_scr, v_scr, *, tq, ppad, p_out, nq):
    # x_ref:  (1, T, C)   f32 block for the current batch element
    # w_ref:  (C, 3*ppad) bf16 fused [Wq^T*scale | Wk^T | Wv^T] (zero-padded lanes)
    # b_ref:  (1, 3*ppad) f32 fused biases (Q bias pre-scaled, zero-padded)
    # o_ref:  (1, T, P)   output block (written per q-tile, un-padded)
    # k_scr:  (T, ppad)   bf16 VMEM scratch for K
    # v_scr:  (T, P)      bf16 VMEM scratch for V
    f32 = jnp.float32
    bf16 = jnp.bfloat16

    # Static Python loop: nq is tiny (<= 2 at block_size=256).
    for qi in range(nq):
        r0 = qi * tq

        # ---- fused QKV projection for this row chunk (computed exactly once) ----
        x_c = x_ref[0, r0:r0 + tq, :].astype(bf16)                       # (tq, C)
        qkv = jnp.dot(x_c, w_ref[...], preferred_element_type=f32)       # (tq, 3*ppad)
        qkv = qkv + b_ref[...]
        q = qkv[:, :ppad].astype(bf16)                                   # pre-scaled Q
        k_scr[r0:r0 + tq, :] = qkv[:, ppad:2 * ppad].astype(bf16)
        v_scr[r0:r0 + tq, :] = qkv[:, 2 * ppad:2 * ppad + p_out].astype(bf16)

        # ---- causal, KV-chunked online softmax + PV accumulation ----
        # q-tile qi only attends to kv chunks 0..qi (later chunks are fully masked).
        for c in range(qi + 1):
            c0 = c * tq
            k_c = k_scr[c0:c0 + tq, :]                                   # (tq, ppad)
            v_c = v_scr[c0:c0 + tq, :]                                   # (tq, P)

            # scores: contract last dims (NT form), f32 accumulation on the MXU
            s = lax.dot_general(q, k_c, (((1,), (1,)), ((), ())),
                                preferred_element_type=f32)              # (tq, tq)

            if c == qi:
                # diagonal chunk: causal mask (local indices == global since c0 == r0)
                row = lax.broadcasted_iota(jnp.int32, (tq, tq), 0)
                col = lax.broadcasted_iota(jnp.int32, (tq, tq), 1)
                s = jnp.where(col <= row, s, f32(-1e30))                 # NaN-safe finite

            if c == 0:
                m = jnp.max(s, axis=-1, keepdims=True)
                e = jnp.exp(s - m)
                l = jnp.sum(e, axis=-1, keepdims=True)
                acc = jnp.dot(e.astype(bf16), v_c,
                              preferred_element_type=f32)                # (tq, P)
            else:
                m_new = jnp.maximum(m, jnp.max(s, axis=-1, keepdims=True))
                alpha = jnp.exp(m - m_new)
                e = jnp.exp(s - m_new)
                l = alpha * l + jnp.sum(e, axis=-1, keepdims=True)
                acc = alpha * acc + jnp.dot(e.astype(bf16), v_c,
                                            preferred_element_type=f32)
                m = m_new

        # dropout: eval-mode identity (see TODO at top of file)
        out = acc * pl.reciprocal(l, approx=True)                        # (tq, P) f32
        o_ref[0, r0:r0 + tq, :] = out.astype(o_ref.dtype)


def head_forward(x, wq, bq, wk, bk, wv, bv):
    """x: (B, T, C) f32; w*: (P, C) nn.Linear-style weights; b*: (P,) biases."""
    B, T, C = x.shape
    P = wq.shape[0]
    scale = float(C) ** -0.5

    f32 = jnp.float32
    ppad = ((P + 127) // 128) * 128          # lane-aligned padded head width for Q/K
    tq = 128 if (T % 128 == 0) else T        # q-tile / kv-chunk size
    nq = T // tq

    # Fused, padded, pre-transposed weights: [ Wq^T*scale | Wk^T | Wv^T ], each slice
    # zero-padded to `ppad` lanes so in-kernel slices are lane-aligned.
    w_fused = jnp.zeros((C, 3 * ppad), f32)
    w_fused = w_fused.at[:, 0:P].set(wq.T.astype(f32) * scale)
    w_fused = w_fused.at[:, ppad:ppad + P].set(wk.T.astype(f32))
    w_fused = w_fused.at[:, 2 * ppad:2 * ppad + P].set(wv.T.astype(f32))
    w_fused = w_fused.astype(jnp.bfloat16)

    b_fused = jnp.zeros((1, 3 * ppad), f32)
    b_fused = b_fused.at[0, 0:P].set(bq.astype(f32) * scale)
    b_fused = b_fused.at[0, ppad:ppad + P].set(bk.astype(f32))
    b_fused = b_fused.at[0, 2 * ppad:2 * ppad + P].set(bv.astype(f32))

    kernel = functools.partial(_head_kernel, tq=tq, ppad=ppad, p_out=P, nq=nq)

    grid_spec = pltpu.PrefetchScalarGridSpec(
        num_scalar_prefetch=0,
        grid=(B,),
        in_specs=[
            pl.BlockSpec((1, T, C), lambda b: (b, 0, 0)),          # x (f32, full seq)
            pl.BlockSpec((C, 3 * ppad), lambda b: (0, 0)),          # fused W (fetched once)
            pl.BlockSpec((1, 3 * ppad), lambda b: (0, 0)),          # fused bias
        ],
        out_specs=pl.BlockSpec((1, T, P), lambda b: (b, 0, 0)),     # direct, un-padded
        scratch_shapes=[
            pltpu.VMEM((T, ppad), jnp.bfloat16),                    # K scratch
            pltpu.VMEM((T, P), jnp.bfloat16),                       # V scratch
        ],
    )

    return pl.pallas_call(
        kernel,
        out_shape=jax.ShapeDtypeStruct((B, T, P), x.dtype),
        grid_spec=grid_spec,
        compiler_params=pltpu.CompilerParams(
            dimension_semantics=("parallel",)),
    )(x, w_fused, b_fused)


def _reference(x, wq, bq, wk, bk, wv, bv):
    """Plain-JAX f32 reference mirroring the PyTorch forward (eval mode)."""
    B, T, C = x.shape
    q = x @ wq.T + bq
    k = x @ wk.T + bk
    v = x @ wv.T + bv
    w = jnp.einsum("btd,bsd->bts", q, k) * (C ** -0.5)
    mask = jnp.tril(jnp.ones((T, T), dtype=bool))
    w = jnp.where(mask, w, -jnp.inf)
    w = jax.nn.softmax(w, axis=-1)
    return jnp.einsum("bts,bsd->btd", w, v)


def _run_case(key, B, T, C, P):
    k_x, k_q, k_bq, k_k, k_bk, k_v, k_bv = jax.random.split(key, 7)
    x = jax.random.normal(k_x, (B, T, C), dtype=jnp.float32)

    lim = 1.0 / (C ** 0.5)
    wq = jax.random.uniform(k_q, (P, C), minval=-lim, maxval=lim)
    bq = jax.random.uniform(k_bq, (P,), minval=-lim, maxval=lim)
    wk = jax.random.uniform(k_k, (P, C), minval=-lim, maxval=lim)
    bk = jax.random.uniform(k_bk, (P,), minval=-lim, maxval=lim)
    wv = jax.random.uniform(k_v, (P, C), minval=-lim, maxval=lim)
    bv = jax.random.uniform(k_bv, (P,), minval=-lim, maxval=lim)

    out = head_forward(x, wq, bq, wk, bk, wv, bv)
    out = jax.block_until_ready(out)

    ref = _reference(x, wq, bq, wk, bk, wv, bv)
    assert out.shape == (B, T, P), (out.shape, (B, T, P))
    # bf16 matmul operands + approx reciprocal -> loose tolerance vs. pure-f32 ref
    assert jnp.allclose(out, ref, atol=5e-2, rtol=5e-2), (
        f"mismatch vs reference (T={T}), max abs err="
        f"{float(jnp.max(jnp.abs(out - ref)))}")


if __name__ == "__main__":
    key = jax.random.PRNGKey(0)
    k1, k2 = jax.random.split(key)

    # small shape (single q-tile / single kv-chunk path)
    _run_case(k1, B=2, T=8, C=N_EMBED, P=64)
    # full block_size shape (2 q-tiles, causal chunk skip exercised)
    _run_case(k2, B=2, T=BLOCK_SIZE, C=N_EMBED, P=64)

    print("KERNEL_OK")
</pallas_src>

<mosaic_0001>
module attributes {stable_mosaic.version = 11 : i64} {
  func.func @_head_kernel(%arg0: i32, %arg1: memref<1x8x384xf32, #tpu.memory_space<vmem>>, %arg2: memref<384x384xbf16, #tpu.memory_space<vmem>>, %arg3: memref<1x384xf32, #tpu.memory_space<vmem>>, %arg4: memref<1x8x64xf32, #tpu.memory_space<vmem>>, %arg5: memref<8x128xbf16, #tpu.memory_space<vmem>>, %arg6: memref<8x64xbf16, #tpu.memory_space<vmem>>) attributes {dimension_semantics = [#tpu.dimension_semantics<parallel>], iteration_bounds = array<i64: 2>, scalar_prefetch = 0 : i64, scratch_operands = 2 : i64, tpu.core_type = #tpu.core_type<tc>, window_params = [{transform_indices = @transform_0, window_bounds = array<i64: 1, 8, 384>}, {pipeline_mode = #tpu.pipeline_mode<synchronous>, transform_indices = @transform_1, window_bounds = array<i64: 384, 384>}, {pipeline_mode = #tpu.pipeline_mode<synchronous>, transform_indices = @transform_2, window_bounds = array<i64: 1, 384>}, {transform_indices = @transform_3, window_bounds = array<i64: 1, 8, 64>}]} {
    %c0 = arith.constant 0 : index
    %c0_0 = arith.constant 0 : index
    %c0_1 = arith.constant 0 : index
    %0 = vector.load %arg1[%c0, %c0_0, %c0_1] : memref<1x8x384xf32, #tpu.memory_space<vmem>>, vector<1x8x384xf32>
    %1 = vector.shape_cast %0 : vector<1x8x384xf32> to vector<8x384xf32>
    %2 = arith.truncf %1 : vector<8x384xf32> to vector<8x384xbf16>
    %c0_2 = arith.constant 0 : index
    %c0_3 = arith.constant 0 : index
    %3 = vector.load %arg2[%c0_2, %c0_3] : memref<384x384xbf16, #tpu.memory_space<vmem>>, vector<384x384xbf16>
    %cst = arith.constant dense<0.000000e+00> : vector<8x384xf32>
    %4 = tpu.matmul %2, %3, %cst {dimension_numbers = #tpu.dot_dimension_numbers<[1], [0], [0], [1], [0, 0, 1, 1], [], []>} : vector<8x384xbf16>, vector<384x384xbf16>, vector<8x384xf32> -> vector<8x384xf32>
    %c0_4 = arith.constant 0 : index
    %c0_5 = arith.constant 0 : index
    %5 = vector.load %arg3[%c0_4, %c0_5] : memref<1x384xf32, #tpu.memory_space<vmem>>, vector<1x384xf32>
    %6 = vector.broadcast %5 : vector<1x384xf32> to vector<8x384xf32>
    %7 = arith.addf %4, %6 : vector<8x384xf32>
    %8 = vector.extract_strided_slice %7 {offsets = [0, 0], sizes = [8, 128], strides = [1, 1]} : vector<8x384xf32> to vector<8x128xf32>
    %9 = arith.truncf %8 : vector<8x128xf32> to vector<8x128xbf16>
    %10 = vector.extract_strided_slice %7 {offsets = [0, 128], sizes = [8, 128], strides = [1, 1]} : vector<8x384xf32> to vector<8x128xf32>
    %11 = arith.truncf %10 : vector<8x128xf32> to vector<8x128xbf16>
    %c0_6 = arith.constant 0 : index
    %c0_7 = arith.constant 0 : index
    %12 = vector.load %arg5[%c0_6, %c0_7] : memref<8x128xbf16, #tpu.memory_space<vmem>>, vector<8x128xbf16>
    tpu.vector_store %arg5[%c0_6, %c0_7], %11 {strides = array<i32>} : memref<8x128xbf16, #tpu.memory_space<vmem>>, vector<8x128xbf16>,
    %13 = vector.extract_strided_slice %7 {offsets = [0, 256], sizes = [8, 64], strides = [1, 1]} : vector<8x384xf32> to vector<8x64xf32>
    %14 = arith.truncf %13 : vector<8x64xf32> to vector<8x64xbf16>
    %c0_8 = arith.constant 0 : index
    %c0_9 = arith.constant 0 : index
    %15 = vector.load %arg6[%c0_8, %c0_9] : memref<8x64xbf16, #tpu.memory_space<vmem>>, vector<8x64xbf16>
    tpu.vector_store %arg6[%c0_8, %c0_9], %14 {strides = array<i32>} : memref<8x64xbf16, #tpu.memory_space<vmem>>, vector<8x64xbf16>,
    %c0_10 = arith.constant 0 : index
    %c0_11 = arith.constant 0 : index
    %16 = vector.load %arg5[%c0_10, %c0_11] : memref<8x128xbf16, #tpu.memory_space<vmem>>, vector<8x128xbf16>
    %c0_12 = arith.constant 0 : index
    %c0_13 = arith.constant 0 : index
    %17 = vector.load %arg6[%c0_12, %c0_13] : memref<8x64xbf16, #tpu.memory_space<vmem>>, vector<8x64xbf16>
    %cst_14 = arith.constant dense<0.000000e+00> : vector<8x8xf32>
    %18 = tpu.matmul %9, %16, %cst_14 {dimension_numbers = #tpu.dot_dimension_numbers<[1], [1], [0], [0], [0, 0, 1, 0], [], []>} : vector<8x128xbf16>, vector<8x128xbf16>, vector<8x8xf32> -> vector<8x8xf32>
    %19 = tpu.iota {dimensions = array<i32: 0>} : vector<8x8xi32>
    %20 = tpu.iota {dimensions = array<i32: 1>} : vector<8x8xi32>
    %21 = arith.cmpi sle, %20, %19 : vector<8x8xi32>
    %cst_15 = arith.constant -1.000000e+30 : f32
    %22 = vector.broadcast %cst_15 : f32 to vector<8x8xf32>
    %23 = arith.select %21, %18, %22 : vector<8x8xi1>, vector<8x8xf32>
    %cst_16 = arith.constant dense<0xFF800000> : vector<8xf32>
    %24 = vector.multi_reduction <maximumf>, %23, %cst_16 [1] : vector<8x8xf32> to vector<8xf32>
    %25 = vector.shape_cast %24 : vector<8xf32> to vector<8x1xf32>
    %26 = vector.broadcast %25 : vector<8x1xf32> to vector<8x8xf32>
    %27 = arith.subf %23, %26 : vector<8x8xf32>
    %28 = math.exp %27 : vector<8x8xf32>
    %cst_17 = arith.constant dense<0.000000e+00> : vector<8xf32>
    %29 = vector.multi_reduction <add>, %28, %cst_17 [1] : vector<8x8xf32> to vector<8xf32>
    %30 = vector.shape_cast %29 : vector<8xf32> to vector<8x1xf32>
    %31 = arith.truncf %28 : vector<8x8xf32> to vector<8x8xbf16>
    %cst_18 = arith.constant dense<0.000000e+00> : vector<8x64xf32>
    %32 = tpu.matmul %31, %17, %cst_18 {dimension_numbers = #tpu.dot_dimension_numbers<[1], [0], [0], [1], [0, 0, 1, 1], [], []>} : vector<8x8xbf16>, vector<8x64xbf16>, vector<8x64xf32> -> vector<8x64xf32>
    %33 = tpu.reciprocal %30 {approx = true} : vector<8x1xf32> -> vector<8x1xf32>
    %34 = vector.broadcast %33 : vector<8x1xf32> to vector<8x64xf32>
    %35 = arith.mulf %32, %34 : vector<8x64xf32>
    %c0_19 = arith.constant 0 : index
    %c0_20 = arith.constant 0 : index
    %c0_21 = arith.constant 0 : index
    %36 = vector.load %arg4[%c0_19, %c0_20, %c0_21] : memref<1x8x64xf32, #tpu.memory_space<vmem>>, vector<1x8x64xf32>
    %37 = vector.shape_cast %36 : vector<1x8x64xf32> to vector<8x64xf32>
    %38 = vector.shape_cast %35 : vector<8x64xf32> to vector<1x8x64xf32>
    tpu.vector_store %arg4[%c0_19, %c0_20, %c0_21], %38 {strides = array<i32>} : memref<1x8x64xf32, #tpu.memory_space<vmem>>, vector<1x8x64xf32>,
    return
  }
  func.func @transform_0(%arg0: i32) -> (i32, i32, i32) {
    %c0_i32 = arith.constant 0 : i32
    %c0_i32_0 = arith.constant 0 : i32
    %c0_i32_1 = arith.constant 0 : i32
    return %arg0, %c0_i32, %c0_i32_0 : i32, i32, i32
  }
  func.func @transform_1(%arg0: i32) -> (i32, i32) {
    %c0_i32 = arith.constant 0 : i32
    %c0_i32_0 = arith.constant 0 : i32
    %c0_i32_1 = arith.constant 0 : i32
    return %c0_i32, %c0_i32_0 : i32, i32
  }
  func.func @transform_2(%arg0: i32) -> (i32, i32) {
    %c0_i32 = arith.constant 0 : i32
    %c0_i32_0 = arith.constant 0 : i32
    %c0_i32_1 = arith.constant 0 : i32
    return %c0_i32, %c0_i32_0 : i32, i32
  }
  func.func @transform_3(%arg0: i32) -> (i32, i32, i32) {
    %c0_i32 = arith.constant 0 : i32
    %c0_i32_0 = arith.constant 0 : i32
    %c0_i32_1 = arith.constant 0 : i32
    return %arg0, %c0_i32, %c0_i32_0 : i32, i32, i32
  }
}

</mosaic_0001>

<llo_original>
// kernel: tpu_custom_call.1
$region0: #{tpu_custom_call.1}
  #allocation0 [shape = 'u32[]', space=smem, size = 0x4, offset = 0x4, fixed_abs, tag = 'smem constant byte address 0x4 - core index']
  #allocation1 [shape = 'u32[144,128]{1,0:T(1,128)}', space=vmem, size = 0x12000, scoped, tag = 'internal scratch']
  #allocation2 [shape = 'bf16[8,128]{1,0:T(8,128)(2,1)}', space=vmem, size = 0x800, scoped, tag = 'scratch operand']
  #allocation3 [shape = 'bf16[8,64]{1,0:T(8,128)(2,1)}', space=vmem, size = 0x800, scoped, tag = 'scratch operand']
  %s0 = inlined_call_operand.hbm [shape: f32[2,8,384], index: 0, kind: input, shape index: {}]
  %s1 = inlined_call_operand.hbm [shape: bf16[384,384], index: 1, kind: input, shape index: {}]
  %s2 = inlined_call_operand.vmem [shape: f32[1,384], index: 2, kind: input, shape index: {}]
  %s3 = inlined_call_operand.hbm [shape: f32[2,8,64], index: 3, kind: output, shape index: {}]
  %s4 = sld [smem:[#allocation0]]
  $region53: #{tpu_custom_call.1} parent=0
    _
  %s6 = ssub.s32 1, %s4
  %s7 = scalar_select 0, %s6, %s4
  $region1: #{tpu_custom_call.1} parent=0
    #allocation4 [shape = 'u8[24576]{0}', space=vmem, size = 0x6000, scoped, tag = 'input window, operand 0']
    #allocation5 [shape = 's32[2]{0}', space=sflag, size = 0x8, scoped, tag = 'scoped memory for tpu_custom_call.1']
    #allocation6 [shape = 's32[2]{0}', space=sflag, size = 0x8, scoped, tag = 'scoped memory for tpu_custom_call.1']
    #allocation7 [shape = 'u8[294912]{0}', space=vmem, size = 0x48000, scoped, tag = 'input window, operand 1, single buffered']
    #allocation8 [shape = 's32[1]{0}', space=sflag, size = 0x4, scoped, tag = 'scoped memory for tpu_custom_call.1']
    #allocation9 [shape = 'u8[8192]{0}', space=vmem, size = 0x2000, scoped, tag = 'output window, operand 0']
    %8 = vsyncpa [#allocation5], 0
    %s9 = scalar_lea.sflag [#allocation5], 1
    %10 = vsyncpa %s9, 0
    %11 = vsyncpa [#allocation8], 0
    %12 = vsyncpa [#allocation6], 0
    %s13 = scalar_lea.sflag [#allocation6], 1
    %14 = vsyncpa %s13, 0
    loop: start=0, step=1, limit=4
    $region2: #{tpu_custom_call.1} parent=1 // loop_pre_header
      _
    $region3: #{tpu_custom_call.1} parent=1 // loop_header
      %s16 = sphi 0, %s20
      %p17 = scmp.ge.s32.totalorder %s16, 4
      %s26 = sphi 0, %s28
      %s29 = sphi 0, %s26
      %s30 = sphi 0, %s29
      %s46 = sphi 0, %s30
      %s50 = sphi 0, %s50
      %s52 = sphi 0, %s50
      %s53 = sphi 0, %s52
      %s67 = sphi 0, %s53
      %s71 = sphi 0, %s71
      %s73 = sphi 0, %s71
      %s74 = sphi 0, %s73
      %s88 = sphi 0, %s74
      %s94 = sphi 0, %s96
      %s97 = sphi 0, %s94
      %s98 = sphi 0, %s97
      %s114 = sphi 0, %s98
    $region4: #{tpu_custom_call.1} parent=1 // loop_header_branch
      %19 = sbr.rel (%p17) target = $region8
    $region5: #{tpu_custom_call.1} parent=1 // loop_body
      %s21 = ssub.s32 %s16, 1
      %s22 = ssub.s32 %s16, 2
      %s23 = sadd.s32 %s16, 1
      %s24 = ssub.s32 %s16, %s23
      %p25 = scmp.eq.s32.totalorder %s24, 0
      %s27 = sadd.s32 %s26, 1
      %s28 = scalar_select %p25, %s26, %s27
      %p31 = pneg %p25
      %p32 = scmp.eq.s32.totalorder %s16, 1
      %p33 = por %p31, %p32
      %p34 = scmp.ne.s32.totalorder %s26, %s29
      %p35 = scmp.eq.s32.totalorder %s16, 0
      %p36 = por %p34, %p35
      %p37 = scmp.ne.s32.totalorder %s26, %s29
      %p38 = scmp.eq.s32.totalorder %s21, 1
      %p39 = por %p37, %p38
      %p40 = scmp.ne.s32.totalorder %s29, %s30
      %p41 = scmp.eq.s32.totalorder %s21, 0
      %p42 = por %p40, %p41
      %p43 = scmp.ne.s32.totalorder %s29, %s30
      %p44 = scmp.eq.s32.totalorder %s22, 1
      %p45 = por %p43, %p44
      %p47 = scmp.ne.s32.totalorder %s30, %s46
      %p48 = scmp.eq.s32.totalorder %s22, 0
      %p49 = por %p47, %p48
      %s51 = sadd.s32 %s50, 1
      %p54 = scmp.eq.s32.totalorder %s16, 1
      %p55 = scmp.ne.s32.totalorder %s50, %s52
      %p56 = scmp.eq.s32.totalorder %s16, 0
      %p57 = por %p55, %p56
      %p58 = scmp.ne.s32.totalorder %s50, %s52
      %p59 = scmp.eq.s32.totalorder %s21, 1
      %p60 = por %p58, %p59
      %p61 = scmp.ne.s32.totalorder %s52, %s53
      %p62 = scmp.eq.s32.totalorder %s21, 0
      %p63 = por %p61, %p62
      %p64 = scmp.ne.s32.totalorder %s52, %s53
      %p65 = scmp.eq.s32.totalorder %s22, 1
      %p66 = por %p64, %p65
      %p68 = scmp.ne.s32.totalorder %s53, %s67
      %p69 = scmp.eq.s32.totalorder %s22, 0
      %p70 = por %p68, %p69
      %s72 = sadd.s32 %s71, 1
      %p75 = scmp.eq.s32.totalorder %s16, 1
      %p76 = scmp.ne.s32.totalorder %s71, %s73
      %p77 = scmp.eq.s32.totalorder %s16, 0
      %p78 = por %p76, %p77
      %p79 = scmp.ne.s32.totalorder %s71, %s73
      %p80 = scmp.eq.s32.totalorder %s21, 1
      %p81 = por %p79, %p80
      %p82 = scmp.ne.s32.totalorder %s73, %s74
      %p83 = scmp.eq.s32.totalorder %s21, 0
      %p84 = por %p82, %p83
      %p85 = scmp.ne.s32.totalorder %s73, %s74
      %p86 = scmp.eq.s32.totalorder %s22, 1
      %p87 = por %p85, %p86
      %p89 = scmp.ne.s32.totalorder %s74, %s88
      %p90 = scmp.eq.s32.totalorder %s22, 0
      %p91 = por %p89, %p90
      %s92 = ssub.s32 %s16, %s23
      %p93 = scmp.eq.s32.totalorder %s92, 0
      %s95 = sadd.s32 %s94, 1
      %s96 = scalar_select %p93, %s94, %s95
      %p99 = pneg %p93
      %p100 = scmp.eq.s32.totalorder %s16, 1
      %p101 = por %p99, %p100
      %p102 = scmp.ne.s32.totalorder %s94, %s97
      %p103 = scmp.eq.s32.totalorder %s16, 0
      %p104 = por %p102, %p103
      %p105 = scmp.ne.s32.totalorder %s94, %s97
      %p106 = scmp.eq.s32.totalorder %s21, 1
      %p107 = por %p105, %p106
      %p108 = scmp.ne.s32.totalorder %s97, %s98
      %p109 = scmp.eq.s32.totalorder %s21, 0
      %p110 = por %p108, %p109
      %p111 = scmp.ne.s32.totalorder %s97, %s98
      %p112 = scmp.eq.s32.totalorder %s22, 1
      %p113 = por %p111, %p112
      %p115 = scmp.ne.s32.totalorder %s98, %s114
      %p116 = scmp.eq.s32.totalorder %s22, 0
      %p117 = por %p115, %p116
      %p118 = scmp.le.s32.totalorder 1, %s16
      %p119 = scmp.lt.s32.totalorder %s16, 3
      %p120 = pnand %p118, %p119
      %p121 = pneg %p120
      // Predicated region
      $region9: #{tpu_custom_call.1} parent=5 // pred_check
        _
      $region10: #{tpu_custom_call.1} parent=5 // pred_check_branch
        %123 = sbr.rel (%p120) target = $region12
      $region11: #{tpu_custom_call.1} parent=5 // pred_region
        %s124 = ssub.s32 %s16, 1
        // Predicated region
        $region13: #{tpu_custom_call.1} parent=11 // pred_check
          %p125 = pneg %p63
        $region14: #{tpu_custom_call.1} parent=11 // pred_check_branch
          %127 = sbr.rel (%p125) target = $region16
        $region15: #{tpu_custom_call.1} parent=11 // pred_region
          %s129 = ssub.s32 9216, 9216
          %130 = vsyncadd [#allocation8], %s129
          %s131 = sshll.u32 [#allocation7], 4
          %s132 = int_to_ptr.vmem [resolvable:$true] %s131
          %137 = dma.hbm_to_vmem [thread:$0]  %s1, 9216, %s132, [#allocation8], 192, 192, 12
        $region16: #{tpu_custom_call.1} parent=11 // pred_fallthru
          _
        // Predicated region
        $region17: #{tpu_custom_call.1} parent=11 // pred_check
          %p138 = pneg %p84
        $region18: #{tpu_custom_call.1} parent=11 // pred_check_branch
          %140 = sbr.rel (%p138) target = $region20
        $region19: #{tpu_custom_call.1} parent=11 // pred_region
          _
        $region20: #{tpu_custom_call.1} parent=11 // pred_fallthru
          _
      $region12: #{tpu_custom_call.1} parent=5 // pred_fallthru
        _
      %p141 = scmp.lt.s32.totalorder %s16, 2
      // Predicated region
      $region21: #{tpu_custom_call.1} parent=5 // pred_check
        %p142 = pneg %p141
      $region22: #{tpu_custom_call.1} parent=5 // pred_check_branch
        %144 = sbr.rel (%p142) target = $region24
      $region23: #{tpu_custom_call.1} parent=5 // pred_region
        // Predicated region
        $region25: #{tpu_custom_call.1} parent=23 // pred_check
          %p145 = pneg %p36
        $region26: #{tpu_custom_call.1} parent=23 // pred_check_branch
          %147 = sbr.rel (%p145) target = $region28
        $region27: #{tpu_custom_call.1} parent=23 // pred_region
          %s148 = sand.u32 %s26, 1
          %s149 = scalar_lea.sflag [#allocation5], %s148
          %s150 = sand.u32 %s26, 1
          %s151 = smul.addr %s150, 24
          %s152 = scalar_lea.vmem [#allocation4], %s151
          %s154 = ssub.s32 384, 384
          %155 = vsyncadd %s149, %s154
          %s156 = smul.addr %s16, 3
          %s157 = smul.addr %s156, 128
          %s158 = scalar_lea.hbm %s0, %s157
          %s160 = sshll.u32 %s152, 4
          %s161 = int_to_ptr.vmem [resolvable:$true] %s160
          %163 = dma.hbm_to_vmem [thread:$0]  %s158, 384, %s161, %s149
        $region28: #{tpu_custom_call.1} parent=23 // pred_fallthru
          _
      $region24: #{tpu_custom_call.1} parent=5 // pred_fallthru
        _
      %p164 = scmp.le.s32.totalorder 1, %s16
      %p165 = scmp.lt.s32.totalorder %s16, 3
      %p166 = pnand %p164, %p165
      %p167 = pneg %p166
      // Predicated region
      $region29: #{tpu_custom_call.1} parent=5 // pred_check
        _
      $region30: #{tpu_custom_call.1} parent=5 // pred_check_branch
        %169 = sbr.rel (%p166) target = $region32
      $region31: #{tpu_custom_call.1} parent=5 // pred_region
        %s170 = ssub.s32 %s16, 1
        %s171 = sand.u32 %s29, 1
        %s172 = scalar_lea.sflag [#allocation5], %s171
        %s173 = sand.u32 %s29, 1
        %s174 = smul.addr %s173, 24
        %s175 = scalar_lea.vmem [#allocation4], %s174
        // Predicated region
        $region33: #{tpu_custom_call.1} parent=31 // pred_check
          %p176 = pneg %p42
        $region34: #{tpu_custom_call.1} parent=31 // pred_check_branch
          %178 = sbr.rel (%p176) target = $region36
        $region35: #{tpu_custom_call.1} parent=31 // pred_region
          %179 = dma.done %s172, 384
        $region36: #{tpu_custom_call.1} parent=31 // pred_fallthru
          _
        // Predicated region
        $region37: #{tpu_custom_call.1} parent=31 // pred_check
          %p180 = pneg %p63
        $region38: #{tpu_custom_call.1} parent=31 // pred_check_branch
          %182 = sbr.rel (%p180) target = $region40
        $region39: #{tpu_custom_call.1} parent=31 // pred_region
          %183 = dma.done [#allocation8], 9216
        $region40: #{tpu_custom_call.1} parent=31 // pred_fallthru
          _
        %s184 = sand.u32 %s29, 1
        %s185 = scalar_lea.sflag [#allocation5], %s184
        %s186 = sand.u32 %s29, 1
        %s187 = smul.addr %s186, 24
        %s188 = scalar_lea.vmem [#allocation4], %s187
        %p189 = pneg %p42
        %p190 = pneg %p39
        %p191 = pneg %p63
        %p192 = pneg %p60
        %p193 = pneg %p84
        %p194 = pneg %p81
        %p195 = pneg %p110
        %p196 = pneg %p107
        %s197 = sand.u32 %s97, 1
        %s198 = scalar_lea.sflag [#allocation6], %s197
        %s199 = sand.u32 %s97, 1
        %s200 = smul.addr %s199, 8
        %s201 = scalar_lea.vmem [#allocation9], %s200
        %v203 = vld [vmem:[%s175] sm:$0xff]
        %v204 = vld [vmem:[%s175 + $0x8] sm:$0xff]
        %v205 = vld [vmem:[%s175 + $0x10] sm:$0xff]
        %v206 = vpack.c.bf16 %v203, %v203
        %v207 = vpack.c.bf16 %v204, %v204
        %v208 = vpack.c.bf16 %v205, %v205
        %v209 = vld [vmem:[#allocation7] sm:$0xff]
        %v210 = vld [vmem:[#allocation7 + $0x8] sm:$0xf]
        %v211 = vld [vmem:[#allocation7 + $0xc] sm:$0xff]
        %v212 = vld [vmem:[#allocation7 + $0x14] sm:$0xf]
        %v213 = vld [vmem:[#allocation7 + $0x18] sm:$0xff]
        %v214 = vld [vmem:[#allocation7 + $0x20] sm:$0xf]
        %v215 = vld [vmem:[#allocation7 + $0x24] sm:$0xff]
        %v216 = vld [vmem:[#allocation7 + $0x2c] sm:$0xf]
        %v217 = vld [vmem:[#allocation7 + $0x30] sm:$0xff]
        %v218 = vld [vmem:[#allocation7 + $0x38] sm:$0xf]
        %v219 = vld [vmem:[#allocation7 + $0x3c] sm:$0xff]
        %v220 = vld [vmem:[#allocation7 + $0x44] sm:$0xf]
        %v221 = vld [vmem:[#allocation7 + $0x48] sm:$0xff]
        %v222 = vld [vmem:[#allocation7 + $0x50] sm:$0xf]
        %v223 = vld [vmem:[#allocation7 + $0x54] sm:$0xff]
        %v224 = vld [vmem:[#allocation7 + $0x5c] sm:$0xf]
        %v225 = vld [vmem:[#allocation7 + $0x60] sm:$0xff]
        %v226 = vld [vmem:[#allocation7 + $0x68] sm:$0xf]
        %v227 = vld [vmem:[#allocation7 + $0x6c] sm:$0xff]
        %v228 = vld [vmem:[#allocation7 + $0x74] sm:$0xf]
        %v229 = vld [vmem:[#allocation7 + $0x78] sm:$0xff]
        %v230 = vld [vmem:[#allocation7 + $0x80] sm:$0xf]
        %v231 = vld [vmem:[#allocation7 + $0x84] sm:$0xff]
        %v232 = vld [vmem:[#allocation7 + $0x8c] sm:$0xf]
        %v233 = vld [vmem:[#allocation7 + $0x90] sm:$0xff]
        %v234 = vld [vmem:[#allocation7 + $0x98] sm:$0xf]
        %v235 = vld [vmem:[#allocation7 + $0x9c] sm:$0xff]
        %v236 = vld [vmem:[#allocation7 + $0xa4] sm:$0xf]
        %v237 = vld [vmem:[#allocation7 + $0xa8] sm:$0xff]
        %v238 = vld [vmem:[#allocation7 + $0xb0] sm:$0xf]
        %v239 = vld [vmem:[#allocation7 + $0xb4] sm:$0xff]
        %v240 = vld [vmem:[#allocation7 + $0xbc] sm:$0xf]
        %v241 = vld [vmem:[#allocation7 + $0xc0] sm:$0xff]
        %v242 = vld [vmem:[#allocation7 + $0xc8] sm:$0xf]
        %v243 = vld [vmem:[#allocation7 + $0xcc] sm:$0xff]
        %v244 = vld [vmem:[#allocation7 + $0xd4] sm:$0xf]
        %v245 = vld [vmem:[#allocation7 + $0xd8] sm:$0xff]
        %v246 = vld [vmem:[#allocation7 + $0xe0] sm:$0xf]
        %v247 = vld [vmem:[#allocation7 + $0xe4] sm:$0xff]
        %v248 = vld [vmem:[#allocation7 + $0xec] sm:$0xf]
        %v249 = vld [vmem:[#allocation7 + $0xf0] sm:$0xff]
        %v250 = vld [vmem:[#allocation7 + $0xf8] sm:$0xf]
        %v251 = vld [vmem:[#allocation7 + $0xfc] sm:$0xff]
        %v252 = vld [vmem:[#allocation7 + $0x104] sm:$0xf]
        %v253 = vld [vmem:[#allocation7 + $0x108] sm:$0xff]
        %v254 = vld [vmem:[#allocation7 + $0x110] sm:$0xf]
        %v255 = vld [vmem:[#allocation7 + $0x114] sm:$0xff]
        %v256 = vld [vmem:[#allocation7 + $0x11c] sm:$0xf]
        %v257 = vld [vmem:[#allocation7 + $0x120] sm:$0xff]
        %v258 = vld [vmem:[#allocation7 + $0x128] sm:$0xf]
        %v259 = vld [vmem:[#allocation7 + $0x12c] sm:$0xff]
        %v260 = vld [vmem:[#allocation7 + $0x134] sm:$0xf]
        %v261 = vld [vmem:[#allocation7 + $0x138] sm:$0xff]
        %v262 = vld [vmem:[#allocation7 + $0x140] sm:$0xf]
        %v263 = vld [vmem:[#allocation7 + $0x144] sm:$0xff]
        %v264 = vld [vmem:[#allocation7 + $0x14c] sm:$0xf]
        %v265 = vld [vmem:[#allocation7 + $0x150] sm:$0xff]
        %v266 = vld [vmem:[#allocation7 + $0x158] sm:$0xf]
        %v267 = vld [vmem:[#allocation7 + $0x15c] sm:$0xff]
        %v268 = vld [vmem:[#allocation7 + $0x164] sm:$0xf]
        %v269 = vld [vmem:[#allocation7 + $0x168] sm:$0xff]
        %v270 = vld [vmem:[#allocation7 + $0x170] sm:$0xf]
        %v271 = vld [vmem:[#allocation7 + $0x174] sm:$0xff]
        %v272 = vld [vmem:[#allocation7 + $0x17c] sm:$0xf]
        %v273 = vld [vmem:[#allocation7 + $0x180] sm:$0xff]
        %v274 = vld [vmem:[#allocation7 + $0x188] sm:$0xf]
        %v275 = vld [vmem:[#allocation7 + $0x18c] sm:$0xff]
        %v276 = vld [vmem:[#allocation7 + $0x194] sm:$0xf]
        %v277 = vld [vmem:[#allocation7 + $0x198] sm:$0xff]
        %v278 = vld [vmem:[#allocation7 + $0x1a0] sm:$0xf]
        %v279 = vld [vmem:[#allocation7 + $0x1a4] sm:$0xff]
        %v280 = vld [vmem:[#allocation7 + $0x1ac] sm:$0xf]
        %v281 = vld [vmem:[#allocation7 + $0x1b0] sm:$0xff]
        %v282 = vld [vmem:[#allocation7 + $0x1b8] sm:$0xf]
        %v283 = vld [vmem:[#allocation7 + $0x1bc] sm:$0xff]
        %v284 = vld [vmem:[#allocation7 + $0x1c4] sm:$0xf]
        %v285 = vld [vmem:[#allocation7 + $0x1c8] sm:$0xff]
        %v286 = vld [vmem:[#allocation7 + $0x1d0] sm:$0xf]
        %v287 = vld [vmem:[#allocation7 + $0x1d4] sm:$0xff]
        %v288 = vld [vmem:[#allocation7 + $0x1dc] sm:$0xf]
        %v289 = vld [vmem:[#allocation7 + $0x1e0] sm:$0xff]
        %v290 = vld [vmem:[#allocation7 + $0x1e8] sm:$0xf]
        %v291 = vld [vmem:[#allocation7 + $0x1ec] sm:$0xff]
        %v292 = vld [vmem:[#allocation7 + $0x1f4] sm:$0xf]
        %v293 = vld [vmem:[#allocation7 + $0x1f8] sm:$0xff]
        %v294 = vld [vmem:[#allocation7 + $0x200] sm:$0xf]
        %v295 = vld [vmem:[#allocation7 + $0x204] sm:$0xff]
        %v296 = vld [vmem:[#allocation7 + $0x20c] sm:$0xf]
        %v297 = vld [vmem:[#allocation7 + $0x210] sm:$0xff]
        %v298 = vld [vmem:[#allocation7 + $0x218] sm:$0xf]
        %v299 = vld [vmem:[#allocation7 + $0x21c] sm:$0xff]
        %v300 = vld [vmem:[#allocation7 + $0x224] sm:$0xf]
        %v301 = vld [vmem:[#allocation7 + $0x228] sm:$0xff]
        %v302 = vld [vmem:[#allocation7 + $0x230] sm:$0xf]
        %v303 = vld [vmem:[#allocation7 + $0x234] sm:$0xff]
        %v304 = vld [vmem:[#allocation7 + $0x23c] sm:$0xf]
        %v305 = vld [vmem:[%s2] sm:$0x7]
        %v307 = vlaneseq
        %v308 = vshrl.u32 %v307, 7
        %v309 = vsub.s32 0, %v308
        %v310 = vrot.slane %v305, %v309
        %v311 = vlaneseq
        %v312 = vshrl.u32 %v311, 7
        %v313 = vsub.s32 1, %v312
        %v314 = vrot.slane %v305, %v313
        %v315 = vlaneseq
        %v316 = vshrl.u32 %v315, 7
        %v317 = vsub.s32 2, %v316
        %v318 = vrot.slane %v305, %v317
        %v418 = vunpack.c.l.b16 %v209
        %v419 = vunpack.c.h.b16 %v209
        %v420 = vunpack.c.l.b16 %v210
        %v421 = vunpack.c.l.b16 %v211
        %v422 = vunpack.c.h.b16 %v211
        %v423 = vunpack.c.l.b16 %v212
        %v424 = vunpack.c.l.b16 %v213
        %v425 = vunpack.c.h.b16 %v213
        %v426 = vunpack.c.l.b16 %v214
        %v427 = vunpack.c.l.b16 %v215
        %v428 = vunpack.c.h.b16 %v215
        %v429 = vunpack.c.l.b16 %v216
        %v430 = vunpack.c.l.b16 %v217
        %v431 = vunpack.c.h.b16 %v217
        %v432 = vunpack.c.l.b16 %v218
        %v433 = vunpack.c.l.b16 %v219
        %v434 = vunpack.c.h.b16 %v219
        %v435 = vunpack.c.l.b16 %v220
        %v436 = vunpack.c.l.b16 %v221
        %v437 = vunpack.c.h.b16 %v221
        %v438 = vunpack.c.l.b16 %v222
        %v439 = vunpack.c.l.b16 %v223
        %v440 = vunpack.c.h.b16 %v223
        %v441 = vunpack.c.l.b16 %v224
        %v442 = vunpack.c.l.b16 %v225
        %v443 = vunpack.c.h.b16 %v225
        %v444 = vunpack.c.l.b16 %v226
        %v445 = vunpack.c.l.b16 %v227
        %v446 = vunpack.c.h.b16 %v227
        %v447 = vunpack.c.l.b16 %v228
        %v448 = vunpack.c.l.b16 %v229
        %v449 = vunpack.c.h.b16 %v229
        %v450 = vunpack.c.l.b16 %v230
        %v451 = vunpack.c.l.b16 %v231
        %v452 = vunpack.c.h.b16 %v231
        %v453 = vunpack.c.l.b16 %v232
        %v454 = vunpack.c.l.b16 %v233
        %v455 = vunpack.c.h.b16 %v233
        %v456 = vunpack.c.l.b16 %v234
        %v457 = vunpack.c.l.b16 %v235
        %v458 = vunpack.c.h.b16 %v235
        %v459 = vunpack.c.l.b16 %v236
        %v460 = vunpack.c.l.b16 %v237
        %v461 = vunpack.c.h.b16 %v237
        %v462 = vunpack.c.l.b16 %v238
        %v463 = vunpack.c.l.b16 %v239
        %v464 = vunpack.c.h.b16 %v239
        %v465 = vunpack.c.l.b16 %v240
        %v466 = vunpack.c.l.b16 %v241
        %v467 = vunpack.c.h.b16 %v241
        %v468 = vunpack.c.l.b16 %v242
        %v469 = vunpack.c.l.b16 %v243
        %v470 = vunpack.c.h.b16 %v243
        %v471 = vunpack.c.l.b16 %v244
        %v472 = vunpack.c.l.b16 %v245
        %v473 = vunpack.c.h.b16 %v245
        %v474 = vunpack.c.l.b16 %v246
        %v475 = vunpack.c.l.b16 %v247
        %v476 = vunpack.c.h.b16 %v247
        %v477 = vunpack.c.l.b16 %v248
        %v478 = vunpack.c.l.b16 %v249
        %v479 = vunpack.c.h.b16 %v249
        %v480 = vunpack.c.l.b16 %v250
        %v481 = vunpack.c.l.b16 %v251
        %v482 = vunpack.c.h.b16 %v251
        %v483 = vunpack.c.l.b16 %v252
        %v484 = vunpack.c.l.b16 %v253
        %v485 = vunpack.c.h.b16 %v253
        %v486 = vunpack.c.l.b16 %v254
        %v487 = vunpack.c.l.b16 %v255
        %v488 = vunpack.c.h.b16 %v255
        %v489 = vunpack.c.l.b16 %v256
        %v490 = vunpack.c.l.b16 %v257
        %v491 = vunpack.c.h.b16 %v257
        %v492 = vunpack.c.l.b16 %v258
        %v493 = vunpack.c.l.b16 %v259
        %v494 = vunpack.c.h.b16 %v259
        %v495 = vunpack.c.l.b16 %v260
        %v496 = vunpack.c.l.b16 %v261
        %v497 = vunpack.c.h.b16 %v261
        %v498 = vunpack.c.l.b16 %v262
        %v499 = vunpack.c.l.b16 %v263
        %v500 = vunpack.c.h.b16 %v263
        %v501 = vunpack.c.l.b16 %v264
        %v502 = vunpack.c.l.b16 %v265
        %v503 = vunpack.c.h.b16 %v265
        %v504 = vunpack.c.l.b16 %v266
        %v505 = vunpack.c.l.b16 %v267
        %v506 = vunpack.c.h.b16 %v267
        %v507 = vunpack.c.l.b16 %v268
        %v508 = vunpack.c.l.b16 %v269
        %v509 = vunpack.c.h.b16 %v269
        %v510 = vunpack.c.l.b16 %v270
        %v511 = vunpack.c.l.b16 %v271
        %v512 = vunpack.c.h.b16 %v271
        %v513 = vunpack.c.l.b16 %v272
        %v514 = vunpack.c.l.b16 %v273
        %v515 = vunpack.c.h.b16 %v273
        %v516 = vunpack.c.l.b16 %v274
        %v517 = vunpack.c.l.b16 %v275
        %v518 = vunpack.c.h.b16 %v275
        %v519 = vunpack.c.l.b16 %v276
        %v520 = vunpack.c.l.b16 %v277
        %v521 = vunpack.c.h.b16 %v277
        %v522 = vunpack.c.l.b16 %v278
        %v523 = vunpack.c.l.b16 %v279
        %v524 = vunpack.c.h.b16 %v279
        %v525 = vunpack.c.l.b16 %v280
        %v526 = vunpack.c.l.b16 %v281
        %v527 = vunpack.c.h.b16 %v281
        %v528 = vunpack.c.l.b16 %v282
        %v529 = vunpack.c.l.b16 %v283
        %v530 = vunpack.c.h.b16 %v283
        %v531 = vunpack.c.l.b16 %v284
        %v532 = vunpack.c.l.b16 %v285
        %v533 = vunpack.c.h.b16 %v285
        %v534 = vunpack.c.l.b16 %v286
        %v535 = vunpack.c.l.b16 %v287
        %v536 = vunpack.c.h.b16 %v287
        %v537 = vunpack.c.l.b16 %v288
        %v538 = vunpack.c.l.b16 %v289
        %v539 = vunpack.c.h.b16 %v289
        %v540 = vunpack.c.l.b16 %v290
        %v541 = vunpack.c.l.b16 %v291
        %v542 = vunpack.c.h.b16 %v291
        %v543 = vunpack.c.l.b16 %v292
        %v544 = vunpack.c.l.b16 %v293
        %v545 = vunpack.c.h.b16 %v293
        %v546 = vunpack.c.l.b16 %v294
        %v547 = vunpack.c.l.b16 %v295
        %v548 = vunpack.c.h.b16 %v295
        %v549 = vunpack.c.l.b16 %v296
        %v550 = vunpack.c.l.b16 %v297
        %v551 = vunpack.c.h.b16 %v297
        %v552 = vunpack.c.l.b16 %v298
        %v553 = vunpack.c.l.b16 %v299
        %v554 = vunpack.c.h.b16 %v299
        %v555 = vunpack.c.l.b16 %v300
        %v556 = vunpack.c.l.b16 %v301
        %v557 = vunpack.c.h.b16 %v301
        %v558 = vunpack.c.l.b16 %v302
        %v559 = vunpack.c.l.b16 %v303
        %v560 = vunpack.c.h.b16 %v303
        %v561 = vunpack.c.l.b16 %v304
        %v562 = vpack.c.b16 %v421, %v418
        %v563 = vpack.c.b16 %v422, %v419
        %v564 = vpack.c.b16 %v423, %v420
        %v565 = vpack.c.b16 %v427, %v424
        %v566 = vpack.c.b16 %v428, %v425
        %v567 = vpack.c.b16 %v429, %v426
        %v568 = vpack.c.b16 %v433, %v430
        %v569 = vpack.c.b16 %v434, %v431
        %v570 = vpack.c.b16 %v435, %v432
        %v571 = vpack.c.b16 %v439, %v436
        %v572 = vpack.c.b16 %v440, %v437
        %v573 = vpack.c.b16 %v441, %v438
        %v574 = vpack.c.b16 %v445, %v442
        %v575 = vpack.c.b16 %v446, %v443
        %v576 = vpack.c.b16 %v447, %v444
        %v577 = vpack.c.b16 %v451, %v448
        %v578 = vpack.c.b16 %v452, %v449
        %v579 = vpack.c.b16 %v453, %v450
        %v580 = vpack.c.b16 %v457, %v454
        %v581 = vpack.c.b16 %v458, %v455
        %v582 = vpack.c.b16 %v459, %v456
        %v583 = vpack.c.b16 %v463, %v460
        %v584 = vpack.c.b16 %v464, %v461
        %v585 = vpack.c.b16 %v465, %v462
        %v586 = vpack.c.b16 %v469, %v466
        %v587 = vpack.c.b16 %v470, %v467
        %v588 = vpack.c.b16 %v471, %v468
        %v589 = vpack.c.b16 %v475, %v472
        %v590 = vpack.c.b16 %v476, %v473
        %v591 = vpack.c.b16 %v477, %v474
        %v592 = vpack.c.b16 %v481, %v478
        %v593 = vpack.c.b16 %v482, %v479
        %v594 = vpack.c.b16 %v483, %v480
        %v595 = vpack.c.b16 %v487, %v484
        %v596 = vpack.c.b16 %v488, %v485
        %v597 = vpack.c.b16 %v489, %v486
        %v598 = vpack.c.b16 %v493, %v490
        %v599 = vpack.c.b16 %v494, %v491
        %v600 = vpack.c.b16 %v495, %v492
        %v601 = vpack.c.b16 %v499, %v496
        %v602 = vpack.c.b16 %v500, %v497
        %v603 = vpack.c.b16 %v501, %v498
        %v604 = vpack.c.b16 %v505, %v502
        %v605 = vpack.c.b16 %v506, %v503
        %v606 = vpack.c.b16 %v507, %v504
        %v607 = vpack.c.b16 %v511, %v508
        %v608 = vpack.c.b16 %v512, %v509
        %v609 = vpack.c.b16 %v513, %v510
        %v610 = vpack.c.b16 %v517, %v514
        %v611 = vpack.c.b16 %v518, %v515
        %v612 = vpack.c.b16 %v519, %v516
        %v613 = vpack.c.b16 %v523, %v520
        %v614 = vpack.c.b16 %v524, %v521
        %v615 = vpack.c.b16 %v525, %v522
        %v616 = vpack.c.b16 %v529, %v526
        %v617 = vpack.c.b16 %v530, %v527
        %v618 = vpack.c.b16 %v531, %v528
        %v619 = vpack.c.b16 %v535, %v532
        %v620 = vpack.c.b16 %v536, %v533
        %v621 = vpack.c.b16 %v537, %v534
        %v622 = vpack.c.b16 %v541, %v538
        %v623 = vpack.c.b16 %v542, %v539
        %v624 = vpack.c.b16 %v543, %v540
        %v625 = vpack.c.b16 %v547, %v544
        %v626 = vpack.c.b16 %v548, %v545
        %v627 = vpack.c.b16 %v549, %v546
        %v628 = vpack.c.b16 %v553, %v550
        %v629 = vpack.c.b16 %v554, %v551
        %v630 = vpack.c.b16 %v555, %v552
        %v631 = vpack.c.b16 %v559, %v556
        %v632 = vpack.c.b16 %v560, %v557
        %v633 = vpack.c.b16 %v561, %v558
        %706 = vmatprep.subr.bf16.mxu0 %v584
        %707 = vmatpush1.bf16.msra.mxu0 %v583
        %708 = vmatprep.subr.bf16.mxu0 %v581
        %709 = vmatpush1.bf16.msra.mxu0 %v580
        %710 = vmatprep.subr.bf16.mxu0 %v578
        %711 = vmatpush1.bf16.msra.mxu0 %v577
        %712 = vmatprep.subr.bf16.mxu0 %v575
        %713 = vmatpush1.bf16.msra.mxu0 %v574
        %714 = vmatprep.subr.bf16.mxu0 %v572
        %715 = vmatpush1.bf16.msra.mxu0 %v571
        %716 = vmatprep.subr.bf16.mxu0 %v569
        %717 = vmatpush1.bf16.msra.mxu0 %v568
        %718 = vmatprep.subr.bf16.mxu0 %v566
        %719 = vmatpush1.bf16.msra.mxu0 %v565
        %720 = vmatprep.subr.bf16.mxu0 %v563
        %721 = vmatpush1.bf16.msra.mxu0 %v562
        %722 = vmatprep.subr.bf16.mxu0 %v608
        %723 = vmatpush2.bf16.msra.mxu0 %v607
        %724 = vmatprep.subr.bf16.mxu0 %v605
        %725 = vmatpush2.bf16.msra.mxu0 %v604
        %726 = vmatprep.subr.bf16.mxu0 %v602
        %727 = vmatpush2.bf16.msra.mxu0 %v601
        %728 = vmatprep.subr.bf16.mxu0 %v599
        %729 = vmatpush2.bf16.msra.mxu0 %v598
        %730 = vmatprep.subr.bf16.mxu0 %v596
        %731 = vmatpush2.bf16.msra.mxu0 %v595
        %732 = vmatprep.subr.bf16.mxu0 %v593
        %733 = vmatpush2.bf16.msra.mxu0 %v592
        %734 = vmatprep.subr.bf16.mxu0 %v590
        %735 = vmatpush2.bf16.msra.mxu0 %v589
        %736 = vmatprep.subr.bf16.mxu0 %v587
        %737 = vmatpush2.bf16.msra.mxu0 %v586
        %738 = vmatprep.mubr.bf16.mxu0 %v207
        %739 = vmatmul.mubr.bf16.gmra.mxu0 %v206
        %v740 = vpop.f32.mrf.mxu0
        %v741 = vadd.f32 %v310, %v740
        %v742 = vpop.f32.mrf.mxu0
        %v743 = vadd.f32 %v314, %v742
        %v744 = vpop.f32.mrf.mxu0
        %v745 = vpop.f32.mrf.mxu0
        %746 = vdwg.mxu0
        %747 = vmatprep.subr.bf16.mxu0 %v632
        %748 = vmatpush1.bf16.msra.mxu0 %v631
        %749 = vmatprep.subr.bf16.mxu0 %v629
        %750 = vmatpush1.bf16.msra.mxu0 %v628
        %751 = vmatprep.subr.bf16.mxu0 %v626
        %752 = vmatpush1.bf16.msra.mxu0 %v625
        %753 = vmatprep.subr.bf16.mxu0 %v623
        %754 = vmatpush1.bf16.msra.mxu0 %v622
        %755 = vmatprep.subr.bf16.mxu0 %v620
        %756 = vmatpush1.bf16.msra.mxu0 %v619
        %757 = vmatprep.subr.bf16.mxu0 %v617
        %758 = vmatpush1.bf16.msra.mxu0 %v616
        %759 = vmatprep.subr.bf16.mxu0 %v614
        %760 = vmatpush1.bf16.msra.mxu0 %v613
        %761 = vmatprep.subr.bf16.mxu0 %v611
        %762 = vmatpush1.bf16.msra.mxu0 %v610
        %763 = vmatprep.subr.bf16.mxu0 0
        %764 = vmatpush2.bf16.msra.mxu0 0
        %765 = vmatprep.subr.bf16.mxu0 0
        %766 = vmatpush2.bf16.msra.mxu0 0
        %767 = vmatprep.subr.bf16.mxu0 0
        %768 = vmatpush2.bf16.msra.mxu0 0
        %769 = vmatprep.subr.bf16.mxu0 0
        %770 = vmatpush2.bf16.msra.mxu0 0
        %771 = vmatprep.subr.bf16.mxu0 0
        %772 = vmatpush2.bf16.msra.mxu0 0
        %773 = vmatprep.subr.bf16.mxu0 0
        %774 = vmatpush2.bf16.msra.mxu0 0
        %775 = vmatprep.subr.bf16.mxu0 0
        %776 = vmatpush2.bf16.msra.mxu0 0
        %777 = vmatprep.subr.bf16.mxu0 0
        %778 = vmatpush2.bf16.msra.mxu0 0
        %779 = vmatprep.mubr.bf16.mxu0 0
        %780 = vmatmul.mubr.bf16.gmra.mxu0 %v208
        %v781 = vpop.f32.mrf.mxu0
        %v782 = vadd.f32 %v741, %v781
        %v783 = vpop.f32.mrf.mxu0
        %v784 = vadd.f32 %v743, %v783
        %v785 = vpop.f32.mrf.mxu0
        %v786 = vpop.f32.mrf.mxu0
        %787 = vdwg.mxu0
        %788 = vmatprep.subr.bf16.mxu0 0
        %789 = vmatpush1.bf16.msra.mxu0 %v585
        %790 = vmatprep.subr.bf16.mxu0 0
        %791 = vmatpush1.bf16.msra.mxu0 %v582
        %792 = vmatprep.subr.bf16.mxu0 0
        %793 = vmatpush1.bf16.msra.mxu0 %v579
        %794 = vmatprep.subr.bf16.mxu0 0
        %795 = vmatpush1.bf16.msra.mxu0 %v576
        %796 = vmatprep.subr.bf16.mxu0 0
        %797 = vmatpush1.bf16.msra.mxu0 %v573
        %798 = vmatprep.subr.bf16.mxu0 0
        %799 = vmatpush1.bf16.msra.mxu0 %v570
        %800 = vmatprep.subr.bf16.mxu0 0
        %801 = vmatpush1.bf16.msra.mxu0 %v567
        %802 = vmatprep.subr.bf16.mxu0 0
        %803 = vmatpush1.bf16.msra.mxu0 %v564
        %804 = vmatprep.subr.bf16.mxu0 0
        %805 = vmatpush2.bf16.msra.mxu0 %v609
        %806 = vmatprep.subr.bf16.mxu0 0
        %807 = vmatpush2.bf16.msra.mxu0 %v606
        %808 = vmatprep.subr.bf16.mxu0 0
        %809 = vmatpush2.bf16.msra.mxu0 %v603
        %810 = vmatprep.subr.bf16.mxu0 0
        %811 = vmatpush2.bf16.msra.mxu0 %v600
        %812 = vmatprep.subr.bf16.mxu0 0
        %813 = vmatpush2.bf16.msra.mxu0 %v597
        %814 = vmatprep.subr.bf16.mxu0 0
        %815 = vmatpush2.bf16.msra.mxu0 %v594
        %816 = vmatprep.subr.bf16.mxu0 0
        %817 = vmatpush2.bf16.msra.mxu0 %v591
        %818 = vmatprep.subr.bf16.mxu0 0
        %819 = vmatpush2.bf16.msra.mxu0 %v588
        %820 = vmatprep.mubr.bf16.mxu0 %v207
        %821 = vmatmul.mubr.bf16.gmra.mxu0 %v206
        %v822 = vpop.f32.mrf.mxu0
        %v823 = vadd.f32 %v318, %v822
        %v824 = vpop.f32.mrf.mxu0
        %v825 = vpop.f32.mrf.mxu0
        %v826 = vpop.f32.mrf.mxu0
        %827 = vdwg.mxu0
        %828 = vmatprep.subr.bf16.mxu0 0
        %829 = vmatpush1.bf16.msra.mxu0 %v633
        %830 = vmatprep.subr.bf16.mxu0 0
        %831 = vmatpush1.bf16.msra.mxu0 %v630
        %832 = vmatprep.subr.bf16.mxu0 0
        %833 = vmatpush1.bf16.msra.mxu0 %v627
        %834 = vmatprep.subr.bf16.mxu0 0
        %835 = vmatpush1.bf16.msra.mxu0 %v624
        %836 = vmatprep.subr.bf16.mxu0 0
        %837 = vmatpush1.bf16.msra.mxu0 %v621
        %838 = vmatprep.subr.bf16.mxu0 0
        %839 = vmatpush1.bf16.msra.mxu0 %v618
        %840 = vmatprep.subr.bf16.mxu0 0
        %841 = vmatpush1.bf16.msra.mxu0 %v615
        %842 = vmatprep.subr.bf16.mxu0 0
        %843 = vmatpush1.bf16.msra.mxu0 %v612
        %844 = vmatprep.subr.bf16.mxu0 0
        %845 = vmatpush2.bf16.msra.mxu0 0
        %846 = vmatprep.subr.bf16.mxu0 0
        %847 = vmatpush2.bf16.msra.mxu0 0
        %848 = vmatprep.subr.bf16.mxu0 0
        %849 = vmatpush2.bf16.msra.mxu0 0
        %850 = vmatprep.subr.bf16.mxu0 0
        %851 = vmatpush2.bf16.msra.mxu0 0
        %852 = vmatprep.subr.bf16.mxu0 0
        %853 = vmatpush2.bf16.msra.mxu0 0
        %854 = vmatprep.subr.bf16.mxu0 0
        %855 = vmatpush2.bf16.msra.mxu0 0
        %856 = vmatprep.subr.bf16.mxu0 0
        %857 = vmatpush2.bf16.msra.mxu0 0
        %858 = vmatprep.subr.bf16.mxu0 0
        %859 = vmatpush2.bf16.msra.mxu0 0
        %860 = vmatprep.mubr.bf16.mxu0 0
        %861 = vmatmul.mubr.bf16.gmra.mxu0 %v208
        %v862 = vpop.f32.mrf.mxu0
        %v863 = vadd.f32 %v823, %v862
        %v864 = vpop.f32.mrf.mxu0
        %v865 = vpop.f32.mrf.mxu0
        %v866 = vpop.f32.mrf.mxu0
        %867 = vdwg.mxu0
        %v868 = vpack.c.bf16 %v782, %v782
        %v869 = vpack.c.bf16 %v784, %v784
        %870 = vst [vmem:[#allocation2] sm:$0xf] %v869
        %v871 = vpack.c.bf16 %v863, %v863
        %vm872 = vcmask 519168
        %873 = vst.msk [vmem:[#allocation3] sm:$0xf] %vm872, %v871
        %v874 = vld [vmem:[#allocation2] sm:$0xf]
        %v875 = vld [vmem:[#allocation3] sm:$0xf]
        %876 = vmatprep.subr.bf16.mxu0 0
        %877 = vmatpush1.bf16.xpose.msra.mxu0 0
        %878 = vmatprep.subr.bf16.mxu0 0
        %879 = vmatpush1.bf16.xpose.msra.mxu0 0
        %880 = vmatprep.subr.bf16.mxu0 0
        %881 = vmatpush1.bf16.xpose.msra.mxu0 0
        %882 = vmatprep.subr.bf16.mxu0 0
        %883 = vmatpush1.bf16.xpose.msra.mxu0 0
        %884 = vmatprep.subr.bf16.mxu0 0
        %885 = vmatpush1.bf16.xpose.msra.mxu0 0
        %886 = vmatprep.subr.bf16.mxu0 0
        %887 = vmatpush1.bf16.xpose.msra.mxu0 0
        %888 = vmatprep.subr.bf16.mxu0 0
        %889 = vmatpush1.bf16.xpose.msra.mxu0 0
        %890 = vmatprep.subr.bf16.mxu0 0
        %891 = vmatpush1.bf16.xpose.msra.mxu0 %v874
        %892 = vmatprep.subr.bf16.mxu0 0
        %893 = vmatpush2.bf16.xpose.msra.mxu0 0
        %894 = vmatprep.subr.bf16.mxu0 0
        %895 = vmatpush2.bf16.xpose.msra.mxu0 0
        %896 = vmatprep.subr.bf16.mxu0 0
        %897 = vmatpush2.bf16.xpose.msra.mxu0 0
        %898 = vmatprep.subr.bf16.mxu0 0
        %899 = vmatpush2.bf16.xpose.msra.mxu0 0
        %900 = vmatprep.subr.bf16.mxu0 0
        %901 = vmatpush2.bf16.xpose.msra.mxu0 0
        %902 = vmatprep.subr.bf16.mxu0 0
        %903 = vmatpush2.bf16.xpose.msra.mxu0 0
        %904 = vmatprep.subr.bf16.mxu0 0
        %905 = vmatpush2.bf16.xpose.msra.mxu0 0
        %906 = vmatprep.subr.bf16.mxu0 0
        %907 = vmatpush2.bf16.xpose.msra.mxu0 0
        %908 = vmatprep.mubr.bf16.mxu0 0
        %909 = vmatmul.mubr.bf16.gmra.mxu0 %v868
        %v910 = vpop.f32.mrf.mxu0
        %v911 = vadd.f32 0.0, %v910
        %v912 = vpop.f32.mrf.mxu0
        %v913 = vpop.f32.mrf.mxu0
        %v914 = vpop.f32.mrf.mxu0
        %915 = vdwg.mxu0
        %v916 = vlaneseq
        %v917 = vshrl.u32 %v916, 7
        %v918 = vlaneseq
        %v919 = vand.u32 %v918, 127
        %vm920 = vcmp.le.s32.totalorder %v919, %v917
        %v921 = vsel %vm920, %v911, -1e+30
        %vm922 = vcmask 64512
        %v923 = vsel %vm922, %v921, -inf
        %924 = vmax.xlane.f32.xlu0 %v923
        %v925 = vpop.xlane.xlu0 %924
        %v926 = vsub.f32 %v921, %v925
        %v927 = vmul.f32 %v926, 1.442695
        %v928 = vpow.pop %v927
        %v929 = vsel %vm922, %v928, 0.0
        %930 = vadd.xlane.f32.xlu0 %v929
        %v931 = vpop.xlane.xlu0 %930
        %v932 = vpack.c.bf16 %v928, %v928
        %v934 = vsel %vm922, %v932, 0
        %vm936 = vcmask 1043456
        %v938 = vsel %vm936, %v875, 0
        %940 = vmatprep.subr.bf16.mxu0 0
        %941 = vmatpush1.bf16.msra.mxu0 0
        %942 = vmatprep.subr.bf16.mxu0 0
        %943 = vmatpush1.bf16.msra.mxu0 0
        %944 = vmatprep.subr.bf16.mxu0 0
        %945 = vmatpush1.bf16.msra.mxu0 0
        %946 = vmatprep.subr.bf16.mxu0 0
        %947 = vmatpush1.bf16.msra.mxu0 0
        %948 = vmatprep.subr.bf16.mxu0 0
        %949 = vmatpush1.bf16.msra.mxu0 0
        %950 = vmatprep.subr.bf16.mxu0 0
        %951 = vmatpush1.bf16.msra.mxu0 0
        %952 = vmatprep.subr.bf16.mxu0 0
        %953 = vmatpush1.bf16.msra.mxu0 0
        %954 = vmatprep.subr.bf16.mxu0 0
        %955 = vmatpush1.bf16.msra.mxu0 %v938
        %956 = vmatprep.subr.bf16.mxu0 0
        %957 = vmatpush2.bf16.msra.mxu0 0
        %958 = vmatprep.subr.bf16.mxu0 0
        %959 = vmatpush2.bf16.msra.mxu0 0
        %960 = vmatprep.subr.bf16.mxu0 0
        %961 = vmatpush2.bf16.msra.mxu0 0
        %962 = vmatprep.subr.bf16.mxu0 0
        %963 = vmatpush2.bf16.msra.mxu0 0
        %964 = vmatprep.subr.bf16.mxu0 0
        %965 = vmatpush2.bf16.msra.mxu0 0
        %966 = vmatprep.subr.bf16.mxu0 0
        %967 = vmatpush2.bf16.msra.mxu0 0
        %968 = vmatprep.subr.bf16.mxu0 0
        %969 = vmatpush2.bf16.msra.mxu0 0
        %970 = vmatprep.subr.bf16.mxu0 0
        %971 = vmatpush2.bf16.msra.mxu0 0
        %972 = vmatprep.mubr.bf16.mxu0 0
        %973 = vmatmul.mubr.bf16.gmra.mxu0 %v934
        %v974 = vpop.f32.mrf.mxu0
        %v975 = vadd.f32 0.0, %v974
        %v976 = vpop.f32.mrf.mxu0
        %v977 = vpop.f32.mrf.mxu0
        %v978 = vpop.f32.mrf.mxu0
        %979 = vdwg.mxu0
        %v980 = vrcp.pop %v931
        %v981 = vmul.f32 %v975, %v980
        %vm982 = vcmask 523264
        %983 = vst.msk [vmem:[%s201] sm:$0xff] %vm982, %v981
        %s984 = sand.u32 %s97, 1
        %s985 = scalar_lea.sflag [#allocation6], %s984
        %s986 = sand.u32 %s97, 1
        %s987 = smul.addr %s986, 8
        %s988 = scalar_lea.vmem [#allocation9], %s987
        // Predicated region
        $region41: #{tpu_custom_call.1} parent=31 // pred_check
          %p989 = pneg %p107
        $region42: #{tpu_custom_call.1} parent=31 // pred_check_branch
          %991 = sbr.rel (%p989) target = $region44
        $region43: #{tpu_custom_call.1} parent=31 // pred_region
          %s993 = ssub.s32 128, 128
          %994 = vsyncadd %s985, %s993
          %s995 = smul.addr %s21, 128
          %s996 = scalar_lea.hbm %s3, %s995
          %s998 = sshll.u32 %s988, 4
          %s999 = int_to_ptr.vmem [resolvable:$true] %s998
          %1001 = dma.vmem_to_hbm [thread:$0]  %s999, 128, %s996, %s985
        $region44: #{tpu_custom_call.1} parent=31 // pred_fallthru
          _
      $region32: #{tpu_custom_call.1} parent=5 // pred_fallthru
        _
      %p1002 = scmp.le.s32.totalorder 2, %s16
      // Predicated region
      $region45: #{tpu_custom_call.1} parent=5 // pred_check
        %p1003 = pneg %p1002
      $region46: #{tpu_custom_call.1} parent=5 // pred_check_branch
        %1005 = sbr.rel (%p1003) target = $region48
      $region47: #{tpu_custom_call.1} parent=5 // pred_region
        %s1006 = ssub.s32 %s16, 2
        // Predicated region
        $region49: #{tpu_custom_call.1} parent=47 // pred_check
          %p1007 = pneg %p113
        $region50: #{tpu_custom_call.1} parent=47 // pred_check_branch
          %1009 = sbr.rel (%p1007) target = $region52
        $region51: #{tpu_custom_call.1} parent=47 // pred_region
          %s1010 = sand.u32 %s98, 1
          %s1011 = scalar_lea.sflag [#allocation6], %s1010
          %s1012 = sand.u32 %s98, 1
          %s1013 = smul.addr %s1012, 8
          %s1014 = scalar_lea.vmem [#allocation9], %s1013
          %1015 = dma.done %s1011, 128
        $region52: #{tpu_custom_call.1} parent=47 // pred_fallthru
          _
      $region48: #{tpu_custom_call.1} parent=5 // pred_fallthru
        _
    $region6: #{tpu_custom_call.1} parent=1 // loop_footer
      %s20 = sadd.s32 1, %s16
    $region7: #{tpu_custom_call.1} parent=1 // loop_footer_branch
      %15 = sbr.rel target = $region3
    $region8: #{tpu_custom_call.1} parent=1 // loop_exit
      _
    %1016 = vsyncpa [#allocation5], 1
    %s1017 = scalar_lea.sflag [#allocation5], 1
    %1018 = vsyncpa %s1017, 1
    %1019 = vsyncpa [#allocation8], 1
    %1020 = vsyncpa [#allocation6], 1
    %s1021 = scalar_lea.sflag [#allocation6], 1
    %1022 = vsyncpa %s1021, 1

</llo_original>
